<compile_context>
chip_gen: v6e
topology: v6e:2x2x1
jax: 0.10.0
libtpu: 0.0.40
codegen_flags: <defaults>
</compile_context>

<pallas_src>
import functools

import jax
import jax.numpy as jnp
from jax.experimental import pallas as pl
from jax.experimental.pallas import tpu as pltpu


def _round_up(x: int, m: int) -> int:
    return (x + m - 1) // m * m


# ----------------------------------------------------------------------------
# Fused multi-layer SAGEConv kernel.
#   grid = (L, R):  L = number of GCN layers (outer, sequential carry)
#                   R = number of adjacency row tiles (inner)
# ----------------------------------------------------------------------------
def fused_sage_stack_kernel(adj_ref, invdeg_ref, h0_hbm, w_self_ref,
                            w_neigh_ref, b_ref, o_ref, hbuf, dma_sem,
                            *, row_tile, n_pad):
    l = pl.program_id(0)
    r = pl.program_id(1)
    n_layers = pl.num_programs(0)

    # Stage the (bf16) input node features into the carry buffer exactly once,
    # straight from HBM (h0 is never held in a pipelined VMEM block).
    @pl.when((l == 0) & (r == 0))
    def _():
        cp = pltpu.make_async_copy(h0_hbm, hbuf.at[pl.ds(0, n_pad), :], dma_sem)
        cp.start()
        cp.wait()

    rb = l % 2                      # scratch half holding layer-(l-1) features
    read_base = pl.multiple_of(rb * n_pad, row_tile)
    write_base = pl.multiple_of((1 - rb) * n_pad, row_tile)
    row0 = pl.multiple_of(r * row_tile, row_tile)

    # Previous-layer features (bf16 carry; no per-tile cast needed).
    h_prev = hbuf[pl.ds(read_base, n_pad), :]                       # (N_pad, F) bf16
    h_self = hbuf[pl.ds(pl.multiple_of(read_base + row0, row_tile),
                        row_tile), :]                               # (tm, F) bf16

    # Mean aggregation: bf16 MXU matmul (f32 accumulation) + 1/deg VPU scale.
    agg = jnp.dot(adj_ref[...], h_prev,
                  preferred_element_type=jnp.float32)               # (tm, F) f32
    h_neigh = (agg * invdeg_ref[...]).astype(jnp.bfloat16)          # (tm, F) bf16

    # Projection: two accumulating matmuls (no (tm, 2F) concat temp).
    out = jnp.dot(h_self, w_self_ref[0],
                  preferred_element_type=jnp.float32)               # (tm, F) f32
    out = out + jnp.dot(h_neigh, w_neigh_ref[0],
                        preferred_element_type=jnp.float32)
    out = jnp.maximum(out + b_ref[0], 0.0)                          # bias + ReLU
    # TODO(synk): dropout layers are identity in eval mode; not applied here.

    # Always write the output block so no stale VMEM tile is ever written back.
    # At R==1 the output block index is constant over the grid, so the HBM
    # writeback happens exactly once (after the last layer).
    o_ref[...] = out.astype(o_ref.dtype)

    # Carry this layer's activations (bf16) for the next layer.
    # NOTE: padded rows (n..n_pad) carry ReLU(bias); this is harmless because
    # the padded adjacency columns are zero, so they never reach real nodes.
    @pl.when(l < n_layers - 1)
    def _():
        hbuf[pl.ds(pl.multiple_of(write_base + row0, row_tile),
                   row_tile), :] = out.astype(jnp.bfloat16)


# ----------------------------------------------------------------------------
# ConvolutionModule equivalent
# ----------------------------------------------------------------------------
def init_convolution_module(key, in_feats, hidden_feats):
    """Deterministic synthetic parameter init (SAGEConv shapes:
    fc_self (in,out), fc_neigh (in,out), bias (out,))."""
    params = []
    dims = [in_feats] + list(hidden_feats)
    for f_in, f_out in zip(dims[:-1], dims[1:]):
        key, k1, k2, k3 = jax.random.split(key, 4)
        scale = 1.0 / jnp.sqrt(jnp.float32(f_in))
        params.append({
            "w_self":  jax.random.normal(k1, (f_in, f_out), jnp.float32) * scale,
            "w_neigh": jax.random.normal(k2, (f_in, f_out), jnp.float32) * scale,
            "b":       jax.random.normal(k3, (1, f_out), jnp.float32) * 0.01,
        })
    return params


def convolution_module_forward(adj, atom_features, params):
    """Forward pass of ConvolutionModule.

    adj:           (N, N) dense 0/1 adjacency of the (batched) homograph
    atom_features: (N, in_feats) node features
    returns:       (N, hidden_feats[-1]) -> molecule.graph.ndata['h']
    """
    n = adj.shape[0]
    in_feats = atom_features.shape[1]
    out_dims = [p["w_self"].shape[1] for p in params]
    n_layers = len(params)

    f_pad = _round_up(max([in_feats] + out_dims), 128)   # lane-dense features

    # Physical VMEM per core (v7x: 64 MiB, v5e/v6e: 128 MiB); safe fallback.
    try:
        phys_vmem = int(pltpu.get_tpu_info().vmem_capacity_bytes)
    except Exception:
        phys_vmem = 64 * 1024 * 1024

    def _vmem_est(tile, npad):
        return (2 * npad * f_pad * 2          # bf16 layer carry (both halves)
                + 2 * tile * npad * 2         # adjacency tile, double-buffered
                + 2 * 2 * f_pad * f_pad * 2   # W_self / W_neigh blocks, dbl-buf
                + 2 * tile * f_pad * 4        # output tile, double-buffered
                + 4 * tile * f_pad * 4        # in-kernel temps (agg/out/h_neigh)
                + 2 * tile * 128 * 4          # 1/deg (lane padded)
                + 4 * f_pad * 4)              # bias

    n_pad = _round_up(n, 128)
    budget = int(0.55 * phys_vmem)
    if _vmem_est(n_pad, n_pad) <= budget:
        row_tile = n_pad                 # whole adjacency resident, DMA'd once
    else:
        row_tile = 512                   # tiled rows, pipelined adjacency DMA
        while row_tile > 128 and _vmem_est(row_tile, _round_up(n, row_tile)) > budget:
            row_tile //= 2
        n_pad = _round_up(n, row_tile)
    n_row_tiles = n_pad // row_tile

    # --- pack / pad inputs (0/1 adjacency is exact in bf16) ------------------
    adj_p = jnp.zeros((n_pad, n_pad), jnp.bfloat16).at[:n, :n].set(
        adj.astype(jnp.bfloat16))
    inv_deg = (1.0 / jnp.maximum(adj.sum(axis=1), 1.0)).astype(jnp.float32)
    inv_deg_p = jnp.ones((n_pad, 1), jnp.float32).at[:n, 0].set(inv_deg)
    # h0 is only ever consumed as a bf16 matmul operand -> pre-cast (exact
    # same math as casting inside the kernel) and keep it in HBM.
    h0 = jnp.zeros((n_pad, f_pad), jnp.bfloat16).at[:n, :in_feats].set(
        atom_features.astype(jnp.bfloat16))

    # Per-layer weights, padded to (f_pad, f_pad), bf16.
    w_self = jnp.zeros((n_layers, f_pad, f_pad), jnp.bfloat16)
    w_neigh = jnp.zeros((n_layers, f_pad, f_pad), jnp.bfloat16)
    bias = jnp.zeros((n_layers, 1, f_pad), jnp.float32)
    for li, p in enumerate(params):
        fi, fo = p["w_self"].shape
        w_self = w_self.at[li, :fi, :fo].set(p["w_self"].astype(jnp.bfloat16))
        w_neigh = w_neigh.at[li, :fi, :fo].set(p["w_neigh"].astype(jnp.bfloat16))
        bias = bias.at[li, 0, :fo].set(p["b"].reshape(-1).astype(jnp.float32))

    est = _vmem_est(row_tile, n_pad)
    vmem_limit = int(min(int(0.85 * phys_vmem),
                         max(32 * 1024 * 1024, 2 * est)))

    kernel = functools.partial(fused_sage_stack_kernel,
                               row_tile=row_tile, n_pad=n_pad)

    out = pl.pallas_call(
        kernel,
        out_shape=jax.ShapeDtypeStruct((n_pad, f_pad), jnp.float32),
        grid_spec=pltpu.PrefetchScalarGridSpec(
            num_scalar_prefetch=0,
            grid=(n_layers, n_row_tiles),
            in_specs=[
                pl.BlockSpec((row_tile, n_pad), lambda l, r: (r, 0)),      # adj rows
                pl.BlockSpec((row_tile, 1), lambda l, r: (r, 0)),          # 1/deg
                pl.BlockSpec(memory_space=pl.ANY),                         # h0 (HBM)
                pl.BlockSpec((1, f_pad, f_pad), lambda l, r: (l, 0, 0)),   # W_self[l]
                pl.BlockSpec((1, f_pad, f_pad), lambda l, r: (l, 0, 0)),   # W_neigh[l]
                pl.BlockSpec((1, 1, f_pad), lambda l, r: (l, 0, 0)),       # b[l]
            ],
            out_specs=pl.BlockSpec((row_tile, f_pad), lambda l, r: (r, 0)),
            scratch_shapes=[
                pltpu.VMEM((2 * n_pad, f_pad), jnp.bfloat16),  # bf16 layer carry
                pltpu.SemaphoreType.DMA(()),                   # h0 staging DMA
            ],
        ),
        compiler_params=pltpu.CompilerParams(
            # Layer axis carries state (h); row tiles also read the full
            # carried h, so both axes must stay sequential on one core.
            # TODO(synk): v7x 2-TC row sharding (VMEM_SHARED carry + barrier)
            # is a further optimization not applied here.
            dimension_semantics=("arbitrary", "arbitrary"),
            vmem_limit_bytes=vmem_limit,
        ),
    )(adj_p, inv_deg_p, h0, w_self, w_neigh, bias)

    return out[:n, :out_dims[-1]]


# ----------------------------------------------------------------------------
# References
# ----------------------------------------------------------------------------
def ref_forward_f32(adj, x, params):
    """Pure-f32 reference (original module semantics)."""
    deg = jnp.maximum(adj.sum(axis=1, keepdims=True), 1.0)
    a = adj / deg
    h = x
    for layer in params:
        h = jnp.maximum(h @ layer["w_self"] + (a @ h) @ layer["w_neigh"]
                        + layer["b"], 0.0)
    return h


def ref_forward_bf16(adj, x, params):
    """Reference mirroring the kernel's bf16-carry / f32-accumulate math."""
    inv = (1.0 / jnp.maximum(adj.sum(axis=1, keepdims=True), 1.0)).astype(jnp.float32)
    a16 = adj.astype(jnp.bfloat16)
    h16 = x.astype(jnp.bfloat16)
    out = None
    for layer in params:
        agg = jnp.dot(a16, h16, preferred_element_type=jnp.float32)
        h_neigh16 = (agg * inv).astype(jnp.bfloat16)
        out = jnp.dot(h16, layer["w_self"].astype(jnp.bfloat16),
                      preferred_element_type=jnp.float32)
        out = out + jnp.dot(h_neigh16, layer["w_neigh"].astype(jnp.bfloat16),
                            preferred_element_type=jnp.float32)
        out = jnp.maximum(out + layer["b"], 0.0)
        h16 = out.astype(jnp.bfloat16)
    return out


if __name__ == "__main__":
    key = jax.random.PRNGKey(0)

    N_ATOMS = 16           # nodes in the (batched) molecular graph
    IN_FEATS = 32
    HIDDEN_FEATS = [32, 32]

    k_feat, k_adj, k_param = jax.random.split(key, 3)

    atom_features = jax.random.normal(k_feat, (N_ATOMS, IN_FEATS), jnp.float32)

    # deterministic synthetic undirected graph with self-loops
    rand = jax.random.uniform(k_adj, (N_ATOMS, N_ATOMS))
    adj = (rand < 0.3).astype(jnp.float32)
    adj = jnp.maximum(adj, adj.T)
    adj = jnp.maximum(adj, jnp.eye(N_ATOMS, dtype=jnp.float32))

    params = init_convolution_module(k_param, IN_FEATS, HIDDEN_FEATS)

    h_out = convolution_module_forward(adj, atom_features, params)
    jax.block_until_ready(h_out)

    assert h_out.shape == (N_ATOMS, HIDDEN_FEATS[-1])

    # Tight check against a reference that uses the same bf16/f32 math.
    ref_bf = ref_forward_bf16(adj, atom_features, params)
    assert jnp.allclose(h_out, ref_bf, atol=2e-3, rtol=2e-3)

    # Looser check against the pure-f32 module semantics (bf16 MXU inputs).
    ref_32 = ref_forward_f32(adj, atom_features, params)
    assert jnp.allclose(h_out, ref_32, atol=5e-2, rtol=5e-2)

    print("KERNEL_OK")
</pallas_src>

<mosaic_0001>
module attributes {stable_mosaic.version = 11 : i64} {
  func.func @fused_sage_stack_kernel(%arg0: i32, %arg1: i32, %arg2: memref<128x128xbf16, #tpu.memory_space<vmem>>, %arg3: memref<128x1xf32, #tpu.memory_space<vmem>>, %arg4: memref<128x128xbf16, #tpu.memory_space<any>>, %arg5: memref<1x128x128xbf16, #tpu.memory_space<vmem>>, %arg6: memref<1x128x128xbf16, #tpu.memory_space<vmem>>, %arg7: memref<1x1x128xf32, #tpu.memory_space<vmem>>, %arg8: memref<128x128xf32, #tpu.memory_space<vmem>>, %arg9: memref<256x128xbf16, #tpu.memory_space<vmem>>, %arg10: memref<!tpu.dma_semaphore, #tpu.memory_space<semaphore_mem>>) attributes {dimension_semantics = [#tpu.dimension_semantics<arbitrary>, #tpu.dimension_semantics<arbitrary>], iteration_bounds = array<i64: 2, 1>, scalar_prefetch = 0 : i64, scratch_operands = 2 : i64, tpu.core_type = #tpu.core_type<tc>, window_params = [{transform_indices = @transform_0, window_bounds = array<i64: 128, 128>}, {transform_indices = @transform_1, window_bounds = array<i64: 128, 1>}, {}, {transform_indices = @transform_3, window_bounds = array<i64: 1, 128, 128>}, {transform_indices = @transform_4, window_bounds = array<i64: 1, 128, 128>}, {transform_indices = @transform_5, window_bounds = array<i64: 1, 1, 128>}, {transform_indices = @transform_6, window_bounds = array<i64: 128, 128>}]} {
    %c0_i32 = arith.constant 0 : i32
    %0 = arith.cmpi eq, %arg0, %c0_i32 : i32
    %c0_i32_0 = arith.constant 0 : i32
    %1 = arith.cmpi eq, %arg1, %c0_i32_0 : i32
    %2 = arith.andi %0, %1 : i1
    %3 = arith.extui %2 : i1 to i32
    %c0_i32_1 = arith.constant 0 : i32
    %4 = arith.cmpi ne, %3, %c0_i32_1 : i32
    scf.if %4 {
      %c0_i32_30 = arith.constant 0 : i32
      %c0_i32_31 = arith.constant 0 : i32
      %51 = tpu.memref_slice %arg9[%c0_i32_30, %c0_i32_31] : memref<256x128xbf16, #tpu.memory_space<vmem>> -> memref<128x128xbf16, #tpu.memory_space<vmem>>
      tpu.enqueue_dma source(%arg4 : memref<128x128xbf16, #tpu.memory_space<any>>) target(%51 : memref<128x128xbf16, #tpu.memory_space<vmem>>) target_semaphore(%arg10 : memref<!tpu.dma_semaphore, #tpu.memory_space<semaphore_mem>>)
      %c0_i32_32 = arith.constant 0 : i32
      %c0_i32_33 = arith.constant 0 : i32
      %52 = tpu.memref_slice %arg9[%c0_i32_32, %c0_i32_33] : memref<256x128xbf16, #tpu.memory_space<vmem>> -> memref<128x128xbf16, #tpu.memory_space<vmem>>
      tpu.wait_dma2 semaphore(%arg10 : memref<!tpu.dma_semaphore, #tpu.memory_space<semaphore_mem>>) src(%arg4 : memref<128x128xbf16, #tpu.memory_space<any>>) dst(%52 : memref<128x128xbf16, #tpu.memory_space<vmem>>)
    } else {
    }
    %c2_i32 = arith.constant 2 : i32
    %c0_i32_2 = arith.constant 0 : i32
    %5 = arith.cmpi eq, %c2_i32, %c0_i32_2 : i32
    %c1_i32 = arith.constant 1 : i32
    %6 = arith.select %5, %c1_i32, %c2_i32 : i32
    %7 = arith.remsi %arg0, %6 : i32
    %c0_i32_3 = arith.constant 0 : i32
    %8 = arith.cmpi ne, %7, %c0_i32_3 : i32
    %c0_i32_4 = arith.constant 0 : i32
    %9 = arith.cmpi slt, %7, %c0_i32_4 : i32
    %c0_i32_5 = arith.constant 0 : i32
    %10 = arith.cmpi slt, %6, %c0_i32_5 : i32
    %11 = arith.xori %9, %10 : i1
    %12 = arith.andi %11, %8 : i1
    %13 = arith.addi %7, %6 : i32
    %14 = arith.select %12, %13, %7 : i32
    %c128_i32 = arith.constant 128 : i32
    %15 = arith.muli %14, %c128_i32 : i32
    %16 = tpu.assume_multiple %15, 128 : i32
    %c1_i32_6 = arith.constant 1 : i32
    %17 = arith.subi %c1_i32_6, %14 : i32
    %c128_i32_7 = arith.constant 128 : i32
    %18 = arith.muli %17, %c128_i32_7 : i32
    %19 = tpu.assume_multiple %18, 128 : i32
    %c128_i32_8 = arith.constant 128 : i32
    %20 = arith.muli %arg1, %c128_i32_8 : i32
    %21 = tpu.assume_multiple %20, 128 : i32
    %22 = arith.index_cast %16 : i32 to index
    %c0 = arith.constant 0 : index
    %23 = vector.load %arg9[%22, %c0] : memref<256x128xbf16, #tpu.memory_space<vmem>>, vector<128x128xbf16>
    %24 = arith.addi %16, %21 : i32
    %25 = tpu.assume_multiple %24, 128 : i32
    %26 = arith.index_cast %25 : i32 to index
    %c0_9 = arith.constant 0 : index
    %27 = vector.load %arg9[%26, %c0_9] : memref<256x128xbf16, #tpu.memory_space<vmem>>, vector<128x128xbf16>
    %c0_10 = arith.constant 0 : index
    %c0_11 = arith.constant 0 : index
    %28 = vector.load %arg2[%c0_10, %c0_11] : memref<128x128xbf16, #tpu.memory_space<vmem>>, vector<128x128xbf16>
    %cst = arith.constant dense<0.000000e+00> : vector<128x128xf32>
    %29 = tpu.matmul %28, %23, %cst {dimension_numbers = #tpu.dot_dimension_numbers<[1], [0], [0], [1], [0, 0, 1, 1], [], []>} : vector<128x128xbf16>, vector<128x128xbf16>, vector<128x128xf32> -> vector<128x128xf32>
    %c0_12 = arith.constant 0 : index
    %c0_13 = arith.constant 0 : index
    %30 = vector.load %arg3[%c0_12, %c0_13] : memref<128x1xf32, #tpu.memory_space<vmem>>, vector<128x1xf32>
    %31 = vector.broadcast %30 : vector<128x1xf32> to vector<128x128xf32>
    %32 = arith.mulf %29, %31 : vector<128x128xf32>
    %33 = arith.truncf %32 : vector<128x128xf32> to vector<128x128xbf16>
    %c0_14 = arith.constant 0 : index
    %c0_15 = arith.constant 0 : index
    %c0_16 = arith.constant 0 : index
    %34 = vector.load %arg5[%c0_14, %c0_15, %c0_16] : memref<1x128x128xbf16, #tpu.memory_space<vmem>>, vector<1x128x128xbf16>
    %35 = vector.shape_cast %34 : vector<1x128x128xbf16> to vector<128x128xbf16>
    %cst_17 = arith.constant dense<0.000000e+00> : vector<128x128xf32>
    %36 = tpu.matmul %27, %35, %cst_17 {dimension_numbers = #tpu.dot_dimension_numbers<[1], [0], [0], [1], [0, 0, 1, 1], [], []>} : vector<128x128xbf16>, vector<128x128xbf16>, vector<128x128xf32> -> vector<128x128xf32>
    %c0_18 = arith.constant 0 : index
    %c0_19 = arith.constant 0 : index
    %c0_20 = arith.constant 0 : index
    %37 = vector.load %arg6[%c0_18, %c0_19, %c0_20] : memref<1x128x128xbf16, #tpu.memory_space<vmem>>, vector<1x128x128xbf16>
    %38 = vector.shape_cast %37 : vector<1x128x128xbf16> to vector<128x128xbf16>
    %cst_21 = arith.constant dense<0.000000e+00> : vector<128x128xf32>
    %39 = tpu.matmul %33, %38, %cst_21 {dimension_numbers = #tpu.dot_dimension_numbers<[1], [0], [0], [1], [0, 0, 1, 1], [], []>} : vector<128x128xbf16>, vector<128x128xbf16>, vector<128x128xf32> -> vector<128x128xf32>
    %40 = arith.addf %36, %39 : vector<128x128xf32>
    %c0_22 = arith.constant 0 : index
    %c0_23 = arith.constant 0 : index
    %c0_24 = arith.constant 0 : index
    %41 = vector.load %arg7[%c0_22, %c0_23, %c0_24] : memref<1x1x128xf32, #tpu.memory_space<vmem>>, vector<1x1x128xf32>
    %42 = vector.shape_cast %41 : vector<1x1x128xf32> to vector<1x128xf32>
    %43 = vector.broadcast %42 : vector<1x128xf32> to vector<128x128xf32>
    %44 = arith.addf %40, %43 : vector<128x128xf32>
    %cst_25 = arith.constant 0.000000e+00 : f32
    %45 = vector.broadcast %cst_25 : f32 to vector<128x128xf32>
    %46 = arith.maximumf %44, %45 : vector<128x128xf32>
    %c0_26 = arith.constant 0 : index
    %c0_27 = arith.constant 0 : index
    %47 = vector.load %arg8[%c0_26, %c0_27] : memref<128x128xf32, #tpu.memory_space<vmem>>, vector<128x128xf32>
    tpu.vector_store %arg8[%c0_26, %c0_27], %46 {strides = array<i32>} : memref<128x128xf32, #tpu.memory_space<vmem>>, vector<128x128xf32>,
    %c1_i32_28 = arith.constant 1 : i32
    %48 = arith.cmpi slt, %arg0, %c1_i32_28 : i32
    %49 = arith.extui %48 : i1 to i32
    %c0_i32_29 = arith.constant 0 : i32
    %50 = arith.cmpi ne, %49, %c0_i32_29 : i32
    scf.if %50 {
      %51 = arith.truncf %46 : vector<128x128xf32> to vector<128x128xbf16>
      %52 = arith.addi %19, %21 : i32
      %53 = tpu.assume_multiple %52, 128 : i32
      %54 = arith.index_cast %53 : i32 to index
      %c0_30 = arith.constant 0 : index
      %55 = vector.load %arg9[%54, %c0_30] : memref<256x128xbf16, #tpu.memory_space<vmem>>, vector<128x128xbf16>
      tpu.vector_store %arg9[%54, %c0_30], %51 {strides = array<i32>} : memref<256x128xbf16, #tpu.memory_space<vmem>>, vector<128x128xbf16>,
    } else {
    }
    return
  }
  func.func @transform_0(%arg0: i32, %arg1: i32) -> (i32, i32) {
    %c0_i32 = arith.constant 0 : i32
    %c0_i32_0 = arith.constant 0 : i32
    return %arg1, %c0_i32 : i32, i32
  }
  func.func @transform_1(%arg0: i32, %arg1: i32) -> (i32, i32) {
    %c0_i32 = arith.constant 0 : i32
    %c0_i32_0 = arith.constant 0 : i32
    return %arg1, %c0_i32 : i32, i32
  }
  func.func @transform_3(%arg0: i32, %arg1: i32) -> (i32, i32, i32) {
    %c0_i32 = arith.constant 0 : i32
    %c0_i32_0 = arith.constant 0 : i32
    %c0_i32_1 = arith.constant 0 : i32
    return %arg0, %c0_i32, %c0_i32_0 : i32, i32, i32
  }
  func.func @transform_4(%arg0: i32, %arg1: i32) -> (i32, i32, i32) {
    %c0_i32 = arith.constant 0 : i32
    %c0_i32_0 = arith.constant 0 : i32
    %c0_i32_1 = arith.constant 0 : i32
    return %arg0, %c0_i32, %c0_i32_0 : i32, i32, i32
  }
  func.func @transform_5(%arg0: i32, %arg1: i32) -> (i32, i32, i32) {
    %c0_i32 = arith.constant 0 : i32
    %c0_i32_0 = arith.constant 0 : i32
    %c0_i32_1 = arith.constant 0 : i32
    return %arg0, %c0_i32, %c0_i32_0 : i32, i32, i32
  }
  func.func @transform_6(%arg0: i32, %arg1: i32) -> (i32, i32) {
    %c0_i32 = arith.constant 0 : i32
    %c0_i32_0 = arith.constant 0 : i32
    return %arg1, %c0_i32 : i32, i32
  }
}

</mosaic_0001>

<llo_original>
// kernel: tpu_custom_call.1
$region0: #{tpu_custom_call.1}
  #allocation0 [shape = 'u32[]', space=smem, size = 0x4, offset = 0x4, fixed_abs, tag = 'smem constant byte address 0x4 - core index']
  #allocation1 [shape = 'u32[144,128]{1,0:T(1,128)}', space=vmem, size = 0x12000, scoped, tag = 'internal scratch']
  #allocation2 [shape = 'bf16[256,128]{1,0:T(8,128)(2,1)}', space=vmem, size = 0x10000, scoped, tag = 'scratch operand']
  #allocation3 [shape = 's32[1]{0}', space=sflag, size = 0x4, scoped, tag = 'scratch operand']
  #allocation10 [shape = 's32[]', space=sflag, size = 0x4, offset = 0, fixed_abs, tag = 'sflag constant byte address 0x0 - dummy sync flag']
  #allocation11 [shape = 's32[]', space=sflag, size = 0x4, offset = 0, fixed_abs, tag = 'sflag constant byte address 0x0 - dummy sync flag']
  #allocation12 [shape = 'u32[]', space=smem, size = 0x4, offset = 0x44, fixed_abs, tag = 'smem constant byte address 0x44 - assertion arg 0']
  #allocation13 [shape = 'u32[]', space=smem, size = 0x4, offset = 0x48, fixed_abs, tag = 'smem constant byte address 0x48 - assertion arg 1']
  %s0 = inlined_call_operand.hbm [shape: bf16[128,128], index: 0, kind: input, shape index: {}]
  %s1 = inlined_call_operand.vmem [shape: f32[128,1], index: 1, kind: input, shape index: {}]
  %s2 = inlined_call_operand.hbm [shape: bf16[128,128], index: 2, kind: input, shape index: {}]
  %s3 = inlined_call_operand.vmem [shape: bf16[2,128,128], index: 3, kind: input, shape index: {}]
  %s4 = inlined_call_operand.hbm [shape: bf16[2,128,128], index: 4, kind: input, shape index: {}]
  %s5 = inlined_call_operand.vmem [shape: f32[2,1,128], index: 5, kind: input, shape index: {}]
  %s6 = inlined_call_operand.hbm [shape: f32[128,128], index: 6, kind: output, shape index: {}]
  %s7 = sld [smem:[#allocation0]]
  $region73: #{tpu_custom_call.1} parent=0
    _
  %s9 = ssub.s32 1, %s7
  %s10 = scalar_select 0, %s9, %s7
  $region1: #{tpu_custom_call.1} parent=0
    #allocation4 [shape = 'u8[32768]{0}', space=vmem, size = 0x8000, scoped, tag = 'input window, operand 0, single buffered']
    #allocation5 [shape = 's32[2]{0}', space=sflag, size = 0x8, scoped, tag = 'scoped memory for tpu_custom_call.1']
    #allocation6 [shape = 's32[2]{0}', space=sflag, size = 0x8, scoped, tag = 'scoped memory for tpu_custom_call.1']
    #allocation7 [shape = 'u8[65536]{0}', space=vmem, size = 0x10000, scoped, tag = 'input window, operand 4']
    #allocation8 [shape = 's32[2]{0}', space=sflag, size = 0x8, scoped, tag = 'scoped memory for tpu_custom_call.1']
    #allocation9 [shape = 'u8[65536]{0}', space=vmem, size = 0x10000, scoped, tag = 'output window, operand 0, single buffered']
    %11 = vsyncpa [#allocation5], 0
    %12 = vsyncpa [#allocation8], 0
    %s13 = scalar_lea.sflag [#allocation8], 1
    %14 = vsyncpa %s13, 0
    %15 = vsyncpa [#allocation6], 0
    loop: start=0, step=1, limit=4
    $region2: #{tpu_custom_call.1} parent=1 // loop_pre_header
      _
    $region3: #{tpu_custom_call.1} parent=1 // loop_header
      %s17 = sphi 0, %s21
      %p18 = scmp.ge.s32.totalorder %s17, 4
      %s24 = sphi 0, %s36
      %s25 = sphi 0, %s32
      %s26 = sphi 0, %s24
      %s27 = sphi 0, %s25
      %s28 = sphi 0, %s26
      %s29 = sphi 0, %s27
      %s39 = sphi 0, %s41
      %s42 = sphi 0, %s39
      %s43 = sphi 0, %s42
      %s59 = sphi 0, %s43
      %s65 = sphi 0, %s67
      %s68 = sphi 0, %s65
      %s69 = sphi 0, %s68
      %s85 = sphi 0, %s69
      %s91 = sphi 0, %s93
      %s94 = sphi 0, %s91
      %s95 = sphi 0, %s94
      %s111 = sphi 0, %s95
      %s117 = sphi 0, %s119
      %s120 = sphi 0, %s117
      %s121 = sphi 0, %s120
      %s137 = sphi 0, %s121
      %s143 = sphi 0, %s145
      %s146 = sphi 0, %s143
      %s147 = sphi 0, %s146
      %s163 = sphi 0, %s147
      %s169 = sphi 0, %s171
      %s172 = sphi 0, %s169
      %s173 = sphi 0, %s172
      %s189 = sphi 0, %s173
    $region4: #{tpu_custom_call.1} parent=1 // loop_header_branch
      %20 = sbr.rel (%p18) target = $region8
    $region5: #{tpu_custom_call.1} parent=1 // loop_body
      %s22 = ssub.s32 %s17, 1
      %s23 = ssub.s32 %s17, 2
      %s30 = sadd.s32 1, %s25
      %p31 = scmp.ge.s32.totalorder %s30, 1
      %s32 = scalar_select %p31, 0, %s30
      %s33 = sadd.s32 1, %s24
      %s34 = scalar_select %p31, %s33, %s24
      %p35 = scmp.ge.s32.totalorder %s34, 2
      %s36 = scalar_select %p35, 0, %s34
      %s37 = ssub.s32 %s25, %s32
      %p38 = scmp.eq.s32.totalorder %s37, 0
      %s40 = sadd.s32 %s39, 1
      %s41 = scalar_select %p38, %s39, %s40
      %p44 = pneg %p38
      %p45 = scmp.eq.s32.totalorder %s17, 1
      %p46 = por %p44, %p45
      %p47 = scmp.ne.s32.totalorder %s39, %s42
      %p48 = scmp.eq.s32.totalorder %s17, 0
      %p49 = por %p47, %p48
      %p50 = scmp.ne.s32.totalorder %s39, %s42
      %p51 = scmp.eq.s32.totalorder %s22, 1
      %p52 = por %p50, %p51
      %p53 = scmp.ne.s32.totalorder %s42, %s43
      %p54 = scmp.eq.s32.totalorder %s22, 0
      %p55 = por %p53, %p54
      %p56 = scmp.ne.s32.totalorder %s42, %s43
      %p57 = scmp.eq.s32.totalorder %s23, 1
      %p58 = por %p56, %p57
      %p60 = scmp.ne.s32.totalorder %s43, %s59
      %p61 = scmp.eq.s32.totalorder %s23, 0
      %p62 = por %p60, %p61
      %s63 = ssub.s32 %s25, %s32
      %p64 = scmp.eq.s32.totalorder %s63, 0
      %s66 = sadd.s32 %s65, 1
      %s67 = scalar_select %p64, %s65, %s66
      %p70 = pneg %p64
      %p71 = scmp.eq.s32.totalorder %s17, 1
      %p72 = por %p70, %p71
      %p73 = scmp.ne.s32.totalorder %s65, %s68
      %p74 = scmp.eq.s32.totalorder %s17, 0
      %p75 = por %p73, %p74
      %p76 = scmp.ne.s32.totalorder %s65, %s68
      %p77 = scmp.eq.s32.totalorder %s22, 1
      %p78 = por %p76, %p77
      %p79 = scmp.ne.s32.totalorder %s68, %s69
      %p80 = scmp.eq.s32.totalorder %s22, 0
      %p81 = por %p79, %p80
      %p82 = scmp.ne.s32.totalorder %s68, %s69
      %p83 = scmp.eq.s32.totalorder %s23, 1
      %p84 = por %p82, %p83
      %p86 = scmp.ne.s32.totalorder %s69, %s85
      %p87 = scmp.eq.s32.totalorder %s23, 0
      %p88 = por %p86, %p87
      %s89 = ssub.s32 %s24, %s36
      %p90 = scmp.eq.s32.totalorder %s89, 0
      %s92 = sadd.s32 %s91, 1
      %s93 = scalar_select %p90, %s91, %s92
      %p96 = pneg %p90
      %p97 = scmp.eq.s32.totalorder %s17, 1
      %p98 = por %p96, %p97
      %p99 = scmp.ne.s32.totalorder %s91, %s94
      %p100 = scmp.eq.s32.totalorder %s17, 0
      %p101 = por %p99, %p100
      %p102 = scmp.ne.s32.totalorder %s91, %s94
      %p103 = scmp.eq.s32.totalorder %s22, 1
      %p104 = por %p102, %p103
      %p105 = scmp.ne.s32.totalorder %s94, %s95
      %p106 = scmp.eq.s32.totalorder %s22, 0
      %p107 = por %p105, %p106
      %p108 = scmp.ne.s32.totalorder %s94, %s95
      %p109 = scmp.eq.s32.totalorder %s23, 1
      %p110 = por %p108, %p109
      %p112 = scmp.ne.s32.totalorder %s95, %s111
      %p113 = scmp.eq.s32.totalorder %s23, 0
      %p114 = por %p112, %p113
      %s115 = ssub.s32 %s24, %s36
      %p116 = scmp.eq.s32.totalorder %s115, 0
      %s118 = sadd.s32 %s117, 1
      %s119 = scalar_select %p116, %s117, %s118
      %p122 = pneg %p116
      %p123 = scmp.eq.s32.totalorder %s17, 1
      %p124 = por %p122, %p123
      %p125 = scmp.ne.s32.totalorder %s117, %s120
      %p126 = scmp.eq.s32.totalorder %s17, 0
      %p127 = por %p125, %p126
      %p128 = scmp.ne.s32.totalorder %s117, %s120
      %p129 = scmp.eq.s32.totalorder %s22, 1
      %p130 = por %p128, %p129
      %p131 = scmp.ne.s32.totalorder %s120, %s121
      %p132 = scmp.eq.s32.totalorder %s22, 0
      %p133 = por %p131, %p132
      %p134 = scmp.ne.s32.totalorder %s120, %s121
      %p135 = scmp.eq.s32.totalorder %s23, 1
      %p136 = por %p134, %p135
      %p138 = scmp.ne.s32.totalorder %s121, %s137
      %p139 = scmp.eq.s32.totalorder %s23, 0
      %p140 = por %p138, %p139
      %s141 = ssub.s32 %s24, %s36
      %p142 = scmp.eq.s32.totalorder %s141, 0
      %s144 = sadd.s32 %s143, 1
      %s145 = scalar_select %p142, %s143, %s144
      %p148 = pneg %p142
      %p149 = scmp.eq.s32.totalorder %s17, 1
      %p150 = por %p148, %p149
      %p151 = scmp.ne.s32.totalorder %s143, %s146
      %p152 = scmp.eq.s32.totalorder %s17, 0
      %p153 = por %p151, %p152
      %p154 = scmp.ne.s32.totalorder %s143, %s146
      %p155 = scmp.eq.s32.totalorder %s22, 1
      %p156 = por %p154, %p155
      %p157 = scmp.ne.s32.totalorder %s146, %s147
      %p158 = scmp.eq.s32.totalorder %s22, 0
      %p159 = por %p157, %p158
      %p160 = scmp.ne.s32.totalorder %s146, %s147
      %p161 = scmp.eq.s32.totalorder %s23, 1
      %p162 = por %p160, %p161
      %p164 = scmp.ne.s32.totalorder %s147, %s163
      %p165 = scmp.eq.s32.totalorder %s23, 0
      %p166 = por %p164, %p165
      %s167 = ssub.s32 %s25, %s32
      %p168 = scmp.eq.s32.totalorder %s167, 0
      %s170 = sadd.s32 %s169, 1
      %s171 = scalar_select %p168, %s169, %s170
      %p174 = pneg %p168
      %p175 = scmp.eq.s32.totalorder %s17, 1
      %p176 = por %p174, %p175
      %p177 = scmp.ne.s32.totalorder %s169, %s172
      %p178 = scmp.eq.s32.totalorder %s17, 0
      %p179 = por %p177, %p178
      %p180 = scmp.ne.s32.totalorder %s169, %s172
      %p181 = scmp.eq.s32.totalorder %s22, 1
      %p182 = por %p180, %p181
      %p183 = scmp.ne.s32.totalorder %s172, %s173
      %p184 = scmp.eq.s32.totalorder %s22, 0
      %p185 = por %p183, %p184
      %p186 = scmp.ne.s32.totalorder %s172, %s173
      %p187 = scmp.eq.s32.totalorder %s23, 1
      %p188 = por %p186, %p187
      %p190 = scmp.ne.s32.totalorder %s173, %s189
      %p191 = scmp.eq.s32.totalorder %s23, 0
      %p192 = por %p190, %p191
      %p193 = scmp.le.s32.totalorder 1, %s17
      %p194 = scmp.lt.s32.totalorder %s17, 3
      %p195 = pnand %p193, %p194
      %p196 = pneg %p195
      // Predicated region
      $region9: #{tpu_custom_call.1} parent=5 // pred_check
        _
      $region10: #{tpu_custom_call.1} parent=5 // pred_check_branch
        %198 = sbr.rel (%p195) target = $region12
      $region11: #{tpu_custom_call.1} parent=5 // pred_region
        %s199 = ssub.s32 %s17, 1
        // Predicated region
        $region13: #{tpu_custom_call.1} parent=11 // pred_check
          %p200 = pneg %p55
        $region14: #{tpu_custom_call.1} parent=11 // pred_check_branch
          %202 = sbr.rel (%p200) target = $region16
        $region15: #{tpu_custom_call.1} parent=11 // pred_region
          %s203 = smul.u32 16, %s27
          %s205 = ssub.s32 1024, 1024
          %206 = vsyncadd [#allocation5], %s205
          %s207 = smul.addr %s203, 64
          %s208 = scalar_lea.hbm %s0, %s207
          %s209 = sshll.u32 [#allocation4], 4
          %s210 = int_to_ptr.vmem [resolvable:$true] %s209
          %215 = dma.hbm_to_vmem [thread:$0]  %s208, 1024, %s210, [#allocation5], 64, 64, 4
        $region16: #{tpu_custom_call.1} parent=11 // pred_fallthru
          _
        // Predicated region
        $region17: #{tpu_custom_call.1} parent=11 // pred_check
          %p216 = pneg %p81
        $region18: #{tpu_custom_call.1} parent=11 // pred_check_branch
          %218 = sbr.rel (%p216) target = $region20
        $region19: #{tpu_custom_call.1} parent=11 // pred_region
          %s219 = smul.u32 16, %s27
          %p220 = scmp.lt.s32.totalorder %s219, 15
          %s221 = scalar_select %p220, %s219, 15
          %s222 = smul.addr %s221, 8
          %s223 = scalar_lea.vmem %s1, %s222
          %s224 = smul.u32 16, %s27
        $region20: #{tpu_custom_call.1} parent=11 // pred_fallthru
          _
      $region12: #{tpu_custom_call.1} parent=5 // pred_fallthru
        _
      %p225 = scmp.lt.s32.totalorder %s17, 2
      // Predicated region
      $region21: #{tpu_custom_call.1} parent=5 // pred_check
        %p226 = pneg %p225
      $region22: #{tpu_custom_call.1} parent=5 // pred_check_branch
        %228 = sbr.rel (%p226) target = $region24
      $region23: #{tpu_custom_call.1} parent=5 // pred_region
        // Predicated region
        $region25: #{tpu_custom_call.1} parent=23 // pred_check
          %p229 = pneg %p101
        $region26: #{tpu_custom_call.1} parent=23 // pred_check_branch
          %231 = sbr.rel (%p229) target = $region28
        $region27: #{tpu_custom_call.1} parent=23 // pred_region
          %p232 = scmp.lt.s32.totalorder %s24, 1
          %s233 = scalar_select %p232, %s24, 1
          %s234 = smul.addr %s233, 16
          %s235 = smul.addr %s234, 4
          %s236 = scalar_lea.vmem %s3, %s235
        $region28: #{tpu_custom_call.1} parent=23 // pred_fallthru
          _
        // Predicated region
        $region29: #{tpu_custom_call.1} parent=23 // pred_check
          %p237 = pneg %p127
        $region30: #{tpu_custom_call.1} parent=23 // pred_check_branch
          %239 = sbr.rel (%p237) target = $region32
        $region31: #{tpu_custom_call.1} parent=23 // pred_region
          %s240 = sand.u32 %s117, 1
          %s241 = scalar_lea.sflag [#allocation8], %s240
          %s242 = sand.u32 %s117, 1
          %s243 = smul.addr %s242, 64
          %s244 = scalar_lea.vmem [#allocation7], %s243
          %s246 = ssub.s32 1024, 1024
          %247 = vsyncadd %s241, %s246
          %s248 = smul.addr %s24, 16
          %s249 = smul.addr %s248, 64
          %s250 = scalar_lea.hbm %s4, %s249
          %s251 = sshll.u32 %s244, 4
          %s252 = int_to_ptr.vmem [resolvable:$true] %s251
          %257 = dma.hbm_to_vmem [thread:$0]  %s250, 1024, %s252, %s241, 64, 64, 4
        $region32: #{tpu_custom_call.1} parent=23 // pred_fallthru
          _
        // Predicated region
        $region33: #{tpu_custom_call.1} parent=23 // pred_check
          %p258 = pneg %p153
        $region34: #{tpu_custom_call.1} parent=23 // pred_check_branch
          %260 = sbr.rel (%p258) target = $region36
        $region35: #{tpu_custom_call.1} parent=23 // pred_region
          %p261 = scmp.lt.s32.totalorder %s24, 1
          %s262 = scalar_select %p261, %s24, 1
          %s263 = scalar_lea.vmem %s5, %s262
        $region36: #{tpu_custom_call.1} parent=23 // pred_fallthru
          _
      $region24: #{tpu_custom_call.1} parent=5 // pred_fallthru
        _
      %p264 = scmp.le.s32.totalorder 1, %s17
      %p265 = scmp.lt.s32.totalorder %s17, 3
      %p266 = pnand %p264, %p265
      %p267 = pneg %p266
      // Predicated region
      $region37: #{tpu_custom_call.1} parent=5 // pred_check
        _
      $region38: #{tpu_custom_call.1} parent=5 // pred_check_branch
        %269 = sbr.rel (%p266) target = $region40
      $region39: #{tpu_custom_call.1} parent=5 // pred_region
        %s270 = ssub.s32 %s17, 1
        // Predicated region
        $region41: #{tpu_custom_call.1} parent=39 // pred_check
          %p271 = pneg %p55
        $region42: #{tpu_custom_call.1} parent=39 // pred_check_branch
          %273 = sbr.rel (%p271) target = $region44
        $region43: #{tpu_custom_call.1} parent=39 // pred_region
          %274 = dma.done [#allocation5], 1024
        $region44: #{tpu_custom_call.1} parent=39 // pred_fallthru
          _
        %s275 = sand.u32 %s120, 1
        %s276 = scalar_lea.sflag [#allocation8], %s275
        %s277 = sand.u32 %s120, 1
        %s278 = smul.addr %s277, 64
        %s279 = scalar_lea.vmem [#allocation7], %s278
        // Predicated region
        $region45: #{tpu_custom_call.1} parent=39 // pred_check
          %p280 = pneg %p133
        $region46: #{tpu_custom_call.1} parent=39 // pred_check_branch
          %282 = sbr.rel (%p280) target = $region48
        $region47: #{tpu_custom_call.1} parent=39 // pred_region
          %283 = dma.done %s276, 1024
        $region48: #{tpu_custom_call.1} parent=39 // pred_fallthru
          _
        %p284 = pneg %p55
        %p285 = pneg %p52
        %s286 = smul.u32 16, %s27
        %p287 = scmp.lt.s32.totalorder %s286, 15
        %s288 = scalar_select %p287, %s286, 15
        %s289 = smul.addr %s288, 8
        %s290 = scalar_lea.vmem %s1, %s289
        %p291 = pneg %p81
        %p292 = pneg %p78
        %p293 = scmp.lt.s32.totalorder %s26, 1
        %s294 = scalar_select %p293, %s26, 1
        %s295 = smul.addr %s294, 16
        %s296 = smul.addr %s295, 4
        %s297 = scalar_lea.vmem %s3, %s296
        %p298 = pneg %p107
        %p299 = pneg %p104
        %s300 = sand.u32 %s120, 1
        %s301 = scalar_lea.sflag [#allocation8], %s300
        %s302 = sand.u32 %s120, 1
        %s303 = smul.addr %s302, 64
        %s304 = scalar_lea.vmem [#allocation7], %s303
        %p305 = pneg %p133
        %p306 = pneg %p130
        %p307 = scmp.lt.s32.totalorder %s26, 1
        %s308 = scalar_select %p307, %s26, 1
        %s309 = scalar_lea.vmem %s5, %s308
        %p310 = pneg %p159
        %p311 = pneg %p156
        %p312 = pneg %p185
        %p313 = pneg %p182
        %s314 = smul.u32 16, %s27
        %s315 = smul.u32 16, %s27
        %p316 = scmp.lt.s32.totalorder %s315, 15
        %s317 = scalar_select %p316, %s315, 15
        %s318 = smul.addr %s317, 8
        %s319 = scalar_lea.vmem %s1, %s318
        %s320 = smul.u32 16, %s27
        %p321 = scmp.lt.s32.totalorder %s26, 1
        %s322 = scalar_select %p321, %s26, 1
        %s323 = smul.addr %s322, 16
        %s324 = smul.addr %s323, 4
        %s325 = scalar_lea.vmem %s3, %s324
        %p326 = scmp.lt.s32.totalorder %s26, 1
        %s327 = scalar_select %p326, %s26, 1
        %s328 = scalar_lea.vmem %s5, %s327
        %s329 = smul.u32 16, %s27
        %p331 = scmp.eq.s32.totalorder %s26, 0
        %p332 = scmp.eq.s32.totalorder %s27, 0
        %p333 = pnand %p331, %p332
        %p334 = pneg %p333
        // Predicated region
        $region49: #{tpu_custom_call.1} parent=39 // pred_check
          _
        $region50: #{tpu_custom_call.1} parent=39 // pred_check_branch
          %336 = sbr.rel (%p333) target = $region52
        $region51: #{tpu_custom_call.1} parent=39 // pred_region
          // Predicated region
          $region53: #{tpu_custom_call.1} parent=51 // pred_check
            _
          $region54: #{tpu_custom_call.1} parent=51 // pred_check_branch
            %338 = sbr.rel target = $region56
          $region55: #{tpu_custom_call.1} parent=51 // pred_region
            %339 = sst [smem:[#allocation12]] [#allocation11]
            %340 = sst [smem:[#allocation13]] [#allocation10]
          $region56: #{tpu_custom_call.1} parent=51 // pred_fallthru
            _
          %342 = shalt.err (0)
          %s344 = sshll.u32 [#allocation2], 4
          %s345 = int_to_ptr.vmem [resolvable:$true] %s344
          %347 = dma.hbm_to_vmem [thread:$0]  %s2, 1024, %s345, [#allocation3]
          %s348 = smul.u32 4, 16
          %s349 = smul.u32 %s348, 1
          %s350 = sshll.u32 %s349, 4
          %351 = dma.done [#allocation3], %s350
        $region52: #{tpu_custom_call.1} parent=39 // pred_fallthru
          _
        %p352 = scmp.lt.s32.totalorder %s26, 0
        %s353 = ssub.s32 0, %s26
        %s354 = scalar_select %p352, %s353, %s26
        %s355 = sand.u32 %s354, 1
        %s356 = ssub.s32 0, %s355
        %s357 = scalar_select %p352, %s356, %s355
        %p358 = scmp.ne.s32.totalorder %s357, 0
        %p359 = scmp.lt.s32.totalorder %s357, 0
        %p360 = pnand %p359, %p358
        %p361 = pneg %p360
        %s362 = sadd.s32 %s357, 2
        %s363 = scalar_select %p361, %s362, %s357
        %s364 = smul.u32 %s363, 128
        %s365 = ssub.s32 1, %s363
        %s366 = smul.u32 %s365, 128
        %s367 = smul.u32 %s27, 128
        %s368 = sshra.s32 %s364, 3
        %s369 = sand.u32 %s364, 7
        %s370 = smul.addr %s368, 4
        %s371 = scalar_lea.vmem [#allocation2], %s370
        %v372 = vld [vmem:[%s371] sm:$0xf]
        %v373 = vld [vmem:[%s371 + $0x4] sm:$0xf]
        %v374 = vld [vmem:[%s371 + $0x8] sm:$0xf]
        %v375 = vld [vmem:[%s371 + $0xc] sm:$0xf]
        %v376 = vld [vmem:[%s371 + $0x10] sm:$0xf]
        %v377 = vld [vmem:[%s371 + $0x14] sm:$0xf]
        %v378 = vld [vmem:[%s371 + $0x18] sm:$0xf]
        %v379 = vld [vmem:[%s371 + $0x1c] sm:$0xf]
        %v380 = vld [vmem:[%s371 + $0x20] sm:$0xf]
        %v381 = vld [vmem:[%s371 + $0x24] sm:$0xf]
        %v382 = vld [vmem:[%s371 + $0x28] sm:$0xf]
        %v383 = vld [vmem:[%s371 + $0x2c] sm:$0xf]
        %v384 = vld [vmem:[%s371 + $0x30] sm:$0xf]
        %v385 = vld [vmem:[%s371 + $0x34] sm:$0xf]
        %v386 = vld [vmem:[%s371 + $0x38] sm:$0xf]
        %v387 = vld [vmem:[%s371 + $0x3c] sm:$0xf]
        %s388 = sadd.s32 %s364, %s367
        %s389 = sshra.s32 %s388, 3
        %s390 = sand.u32 %s388, 7
        %s391 = smul.addr %s389, 4
        %s392 = scalar_lea.vmem [#allocation2], %s391
        %v393 = vld [vmem:[%s392] sm:$0xf]
        %v394 = vld [vmem:[%s392 + $0x4] sm:$0xf]
        %v395 = vld [vmem:[%s392 + $0x8] sm:$0xf]
        %v396 = vld [vmem:[%s392 + $0xc] sm:$0xf]
        %v397 = vld [vmem:[%s392 + $0x10] sm:$0xf]
        %v398 = vld [vmem:[%s392 + $0x14] sm:$0xf]
        %v399 = vld [vmem:[%s392 + $0x18] sm:$0xf]
        %v400 = vld [vmem:[%s392 + $0x1c] sm:$0xf]
        %v401 = vld [vmem:[%s392 + $0x20] sm:$0xf]
        %v402 = vld [vmem:[%s392 + $0x24] sm:$0xf]
        %v403 = vld [vmem:[%s392 + $0x28] sm:$0xf]
        %v404 = vld [vmem:[%s392 + $0x2c] sm:$0xf]
        %v405 = vld [vmem:[%s392 + $0x30] sm:$0xf]
        %v406 = vld [vmem:[%s392 + $0x34] sm:$0xf]
        %v407 = vld [vmem:[%s392 + $0x38] sm:$0xf]
        %v408 = vld [vmem:[%s392 + $0x3c] sm:$0xf]
        %v409 = vld [vmem:[#allocation4] sm:$0xf]
        %v410 = vld [vmem:[#allocation4 + $0x4] sm:$0xf]
        %v411 = vld [vmem:[#allocation4 + $0x8] sm:$0xf]
        %v412 = vld [vmem:[#allocation4 + $0xc] sm:$0xf]
        %v413 = vld [vmem:[#allocation4 + $0x10] sm:$0xf]
        %v414 = vld [vmem:[#allocation4 + $0x14] sm:$0xf]
        %v415 = vld [vmem:[#allocation4 + $0x18] sm:$0xf]
        %v416 = vld [vmem:[#allocation4 + $0x1c] sm:$0xf]
        %v417 = vld [vmem:[#allocation4 + $0x20] sm:$0xf]
        %v418 = vld [vmem:[#allocation4 + $0x24] sm:$0xf]
        %v419 = vld [vmem:[#allocation4 + $0x28] sm:$0xf]
        %v420 = vld [vmem:[#allocation4 + $0x2c] sm:$0xf]
        %v421 = vld [vmem:[#allocation4 + $0x30] sm:$0xf]
        %v422 = vld [vmem:[#allocation4 + $0x34] sm:$0xf]
        %v423 = vld [vmem:[#allocation4 + $0x38] sm:$0xf]
        %v424 = vld [vmem:[#allocation4 + $0x3c] sm:$0xf]
        %v441 = vunpack.c.l.b16 %v409
        %v442 = vunpack.c.l.b16 %v410
        %v443 = vunpack.c.l.b16 %v411
        %v444 = vunpack.c.l.b16 %v412
        %v445 = vunpack.c.l.b16 %v413
        %v446 = vunpack.c.l.b16 %v414
        %v447 = vunpack.c.l.b16 %v415
        %v448 = vunpack.c.l.b16 %v416
        %v449 = vunpack.c.l.b16 %v417
        %v450 = vunpack.c.l.b16 %v418
        %v451 = vunpack.c.l.b16 %v419
        %v452 = vunpack.c.l.b16 %v420
        %v453 = vunpack.c.l.b16 %v421
        %v454 = vunpack.c.l.b16 %v422
        %v455 = vunpack.c.l.b16 %v423
        %v456 = vunpack.c.l.b16 %v424
        %v457 = vpack.c.b16 %v442, %v441
        %v458 = vpack.c.b16 %v444, %v443
        %v459 = vpack.c.b16 %v446, %v445
        %v460 = vpack.c.b16 %v448, %v447
        %v461 = vpack.c.b16 %v450, %v449
        %v462 = vpack.c.b16 %v452, %v451
        %v463 = vpack.c.b16 %v454, %v453
        %v464 = vpack.c.b16 %v456, %v455
        %v489 = vunpack.c.l.b16 %v372
        %v490 = vunpack.c.l.b16 %v373
        %v491 = vunpack.c.l.b16 %v374
        %v492 = vunpack.c.l.b16 %v375
        %v493 = vunpack.c.l.b16 %v376
        %v494 = vunpack.c.l.b16 %v377
        %v495 = vunpack.c.l.b16 %v378
        %v496 = vunpack.c.l.b16 %v379
        %v497 = vunpack.c.l.b16 %v380
        %v498 = vunpack.c.l.b16 %v381
        %v499 = vunpack.c.l.b16 %v382
        %v500 = vunpack.c.l.b16 %v383
        %v501 = vunpack.c.l.b16 %v384
        %v502 = vunpack.c.l.b16 %v385
        %v503 = vunpack.c.l.b16 %v386
        %v504 = vunpack.c.l.b16 %v387
        %v505 = vpack.c.b16 %v490, %v489
        %v506 = vpack.c.b16 %v492, %v491
        %v507 = vpack.c.b16 %v494, %v493
        %v508 = vpack.c.b16 %v496, %v495
        %v509 = vpack.c.b16 %v498, %v497
        %v510 = vpack.c.b16 %v500, %v499
        %v511 = vpack.c.b16 %v502, %v501
        %v512 = vpack.c.b16 %v504, %v503
        %521 = vmatprep.subr.bf16.mxu0 0
        %522 = vmatpush1.bf16.msra.mxu0 %v512
        %523 = vmatprep.subr.bf16.mxu0 0
        %524 = vmatpush1.bf16.msra.mxu0 %v511
        %525 = vmatprep.subr.bf16.mxu0 0
        %526 = vmatpush1.bf16.msra.mxu0 %v510
        %527 = vmatprep.subr.bf16.mxu0 0
        %528 = vmatpush1.bf16.msra.mxu0 %v509
        %529 = vmatprep.subr.bf16.mxu0 0
        %530 = vmatpush1.bf16.msra.mxu0 %v508
        %531 = vmatprep.subr.bf16.mxu0 0
        %532 = vmatpush1.bf16.msra.mxu0 %v507
        %533 = vmatprep.subr.bf16.mxu0 0
        %534 = vmatpush1.bf16.msra.mxu0 %v506
        %535 = vmatprep.subr.bf16.mxu0 0
        %536 = vmatpush1.bf16.msra.mxu0 %v505
        %537 = vmatprep.subr.bf16.mxu0 0
        %538 = vmatpush2.bf16.msra.mxu0 0
        %539 = vmatprep.subr.bf16.mxu0 0
        %540 = vmatpush2.bf16.msra.mxu0 0
        %541 = vmatprep.subr.bf16.mxu0 0
        %542 = vmatpush2.bf16.msra.mxu0 0
        %543 = vmatprep.subr.bf16.mxu0 0
        %544 = vmatpush2.bf16.msra.mxu0 0
        %545 = vmatprep.subr.bf16.mxu0 0
        %546 = vmatpush2.bf16.msra.mxu0 0
        %547 = vmatprep.subr.bf16.mxu0 0
        %548 = vmatpush2.bf16.msra.mxu0 0
        %549 = vmatprep.subr.bf16.mxu0 0
        %550 = vmatpush2.bf16.msra.mxu0 0
        %551 = vmatprep.subr.bf16.mxu0 0
        %552 = vmatpush2.bf16.msra.mxu0 0
        %553 = vmatprep.mubr.bf16.mxu0 0
        %554 = vmatmul.mubr.bf16.gmra.mxu0 %v457
        %v555 = vpop.f32.mrf.mxu0
        %v556 = vadd.f32 0.0, %v555
        %v557 = vpop.f32.mrf.mxu0
        %v558 = vpop.f32.mrf.mxu0
        %v559 = vadd.f32 0.0, %v558
        %v560 = vpop.f32.mrf.mxu0
        %561 = vmatprep.mubr.bf16.mxu0 0
        %562 = vmatmul.mubr.bf16.gmra.mxu0 %v458
        %v563 = vpop.f32.mrf.mxu0
        %v564 = vadd.f32 0.0, %v563
        %v565 = vpop.f32.mrf.mxu0
        %v566 = vpop.f32.mrf.mxu0
        %v567 = vadd.f32 0.0, %v566
        %v568 = vpop.f32.mrf.mxu0
        %569 = vmatprep.mubr.bf16.mxu0 0
        %570 = vmatmul.mubr.bf16.gmra.mxu0 %v459
        %v571 = vpop.f32.mrf.mxu0
        %v572 = vadd.f32 0.0, %v571
        %v573 = vpop.f32.mrf.mxu0
        %v574 = vpop.f32.mrf.mxu0
        %v575 = vadd.f32 0.0, %v574
        %v576 = vpop.f32.mrf.mxu0
        %577 = vmatprep.mubr.bf16.mxu0 0
        %578 = vmatmul.mubr.bf16.gmra.mxu0 %v460
        %v579 = vpop.f32.mrf.mxu0
        %v580 = vadd.f32 0.0, %v579
        %v581 = vpop.f32.mrf.mxu0
        %v582 = vpop.f32.mrf.mxu0
        %v583 = vadd.f32 0.0, %v582
        %v584 = vpop.f32.mrf.mxu0
        %585 = vmatprep.mubr.bf16.mxu0 0
        %586 = vmatmul.mubr.bf16.gmra.mxu0 %v461
        %v587 = vpop.f32.mrf.mxu0
        %v588 = vadd.f32 0.0, %v587
        %v589 = vpop.f32.mrf.mxu0
        %v590 = vpop.f32.mrf.mxu0
        %v591 = vadd.f32 0.0, %v590
        %v592 = vpop.f32.mrf.mxu0
        %593 = vmatprep.mubr.bf16.mxu0 0
        %594 = vmatmul.mubr.bf16.gmra.mxu0 %v462
        %v595 = vpop.f32.mrf.mxu0
        %v596 = vadd.f32 0.0, %v595
        %v597 = vpop.f32.mrf.mxu0
        %v598 = vpop.f32.mrf.mxu0
        %v599 = vadd.f32 0.0, %v598
        %v600 = vpop.f32.mrf.mxu0
        %601 = vmatprep.mubr.bf16.mxu0 0
        %602 = vmatmul.mubr.bf16.gmra.mxu0 %v463
        %v603 = vpop.f32.mrf.mxu0
        %v604 = vadd.f32 0.0, %v603
        %v605 = vpop.f32.mrf.mxu0
        %v606 = vpop.f32.mrf.mxu0
        %v607 = vadd.f32 0.0, %v606
        %v608 = vpop.f32.mrf.mxu0
        %609 = vmatprep.mubr.bf16.mxu0 0
        %610 = vmatmul.mubr.bf16.gmra.mxu0 %v464
        %v611 = vpop.f32.mrf.mxu0
        %v612 = vadd.f32 0.0, %v611
        %v613 = vpop.f32.mrf.mxu0
        %v614 = vpop.f32.mrf.mxu0
        %v615 = vadd.f32 0.0, %v614
        %v616 = vpop.f32.mrf.mxu0
        %617 = vdwg.mxu0
        %v618 = vld [vmem:[%s319] sm:$0xff]
        %v619 = vld [vmem:[%s319 + $0x8] sm:$0xff]
        %v620 = vld [vmem:[%s319 + $0x10] sm:$0xff]
        %v621 = vld [vmem:[%s319 + $0x18] sm:$0xff]
        %v622 = vld [vmem:[%s319 + $0x20] sm:$0xff]
        %v623 = vld [vmem:[%s319 + $0x28] sm:$0xff]
        %v624 = vld [vmem:[%s319 + $0x30] sm:$0xff]
        %v625 = vld [vmem:[%s319 + $0x38] sm:$0xff]
        %v626 = vld [vmem:[%s319 + $0x40] sm:$0xff]
        %v627 = vld [vmem:[%s319 + $0x48] sm:$0xff]
        %v628 = vld [vmem:[%s319 + $0x50] sm:$0xff]
        %v629 = vld [vmem:[%s319 + $0x58] sm:$0xff]
        %v630 = vld [vmem:[%s319 + $0x60] sm:$0xff]
        %v631 = vld [vmem:[%s319 + $0x68] sm:$0xff]
        %v632 = vld [vmem:[%s319 + $0x70] sm:$0xff]
        %v633 = vld [vmem:[%s319 + $0x78] sm:$0xff]
        %635 = vset.pattern.permute.xlu0 0
        %636 = vperm.xlu0 %635, %v618
        %v637 = vpop.permute.xlu0 %636
        %640 = vset.pattern.permute.xlu0 0
        %641 = vperm.xlu0 %640, %v619
        %v642 = vpop.permute.xlu0 %641
        %645 = vset.pattern.permute.xlu0 0
        %646 = vperm.xlu0 %645, %v620
        %v647 = vpop.permute.xlu0 %646
        %650 = vset.pattern.permute.xlu0 0
        %651 = vperm.xlu0 %650, %v621
        %v652 = vpop.permute.xlu0 %651
        %655 = vset.pattern.permute.xlu0 0
        %656 = vperm.xlu0 %655, %v622
        %v657 = vpop.permute.xlu0 %656
        %660 = vset.pattern.permute.xlu0 0
        %661 = vperm.xlu0 %660, %v623
        %v662 = vpop.permute.xlu0 %661
        %665 = vset.pattern.permute.xlu0 0
        %666 = vperm.xlu0 %665, %v624
        %v667 = vpop.permute.xlu0 %666
        %670 = vset.pattern.permute.xlu0 0
        %671 = vperm.xlu0 %670, %v625
        %v672 = vpop.permute.xlu0 %671
        %675 = vset.pattern.permute.xlu0 0
        %676 = vperm.xlu0 %675, %v626
        %v677 = vpop.permute.xlu0 %676
        %680 = vset.pattern.permute.xlu0 0
        %681 = vperm.xlu0 %680, %v627
        %v682 = vpop.permute.xlu0 %681
        %685 = vset.pattern.permute.xlu0 0
        %686 = vperm.xlu0 %685, %v628
        %v687 = vpop.permute.xlu0 %686
        %690 = vset.pattern.permute.xlu0 0
        %691 = vperm.xlu0 %690, %v629
        %v692 = vpop.permute.xlu0 %691
        %695 = vset.pattern.permute.xlu0 0
        %696 = vperm.xlu0 %695, %v630
        %v697 = vpop.permute.xlu0 %696
        %700 = vset.pattern.permute.xlu0 0
        %701 = vperm.xlu0 %700, %v631
        %v702 = vpop.permute.xlu0 %701
        %705 = vset.pattern.permute.xlu0 0
        %706 = vperm.xlu0 %705, %v632
        %v707 = vpop.permute.xlu0 %706
        %710 = vset.pattern.permute.xlu0 0
        %711 = vperm.xlu0 %710, %v633
        %v712 = vpop.permute.xlu0 %711
        %v714 = vmul.f32 %v556, %v637
        %v715 = vmul.f32 %v559, %v642
        %v716 = vmul.f32 %v564, %v647
        %v717 = vmul.f32 %v567, %v652
        %v718 = vmul.f32 %v572, %v657
        %v719 = vmul.f32 %v575, %v662
        %v720 = vmul.f32 %v580, %v667
        %v721 = vmul.f32 %v583, %v672
        %v722 = vmul.f32 %v588, %v677
        %v723 = vmul.f32 %v591, %v682
        %v724 = vmul.f32 %v596, %v687
        %v725 = vmul.f32 %v599, %v692
        %v726 = vmul.f32 %v604, %v697
        %v727 = vmul.f32 %v607, %v702
        %v728 = vmul.f32 %v612, %v707
        %v729 = vmul.f32 %v615, %v712
        %v730 = vpack.c.bf16 %v715, %v714
        %v731 = vpack.c.bf16 %v717, %v716
        %v732 = vpack.c.bf16 %v719, %v718
        %v733 = vpack.c.bf16 %v721, %v720
        %v734 = vpack.c.bf16 %v723, %v722
        %v735 = vpack.c.bf16 %v725, %v724
        %v736 = vpack.c.bf16 %v727, %v726
        %v737 = vpack.c.bf16 %v729, %v728
        %v738 = vld [vmem:[%s325] sm:$0xf]
        %v739 = vld [vmem:[%s325 + $0x4] sm:$0xf]
        %v740 = vld [vmem:[%s325 + $0x8] sm:$0xf]
        %v741 = vld [vmem:[%s325 + $0xc] sm:$0xf]
        %v742 = vld [vmem:[%s325 + $0x10] sm:$0xf]
        %v743 = vld [vmem:[%s325 + $0x14] sm:$0xf]
        %v744 = vld [vmem:[%s325 + $0x18] sm:$0xf]
        %v745 = vld [vmem:[%s325 + $0x1c] sm:$0xf]
        %v746 = vld [vmem:[%s325 + $0x20] sm:$0xf]
        %v747 = vld [vmem:[%s325 + $0x24] sm:$0xf]
        %v748 = vld [vmem:[%s325 + $0x28] sm:$0xf]
        %v749 = vld [vmem:[%s325 + $0x2c] sm:$0xf]
        %v750 = vld [vmem:[%s325 + $0x30] sm:$0xf]
        %v751 = vld [vmem:[%s325 + $0x34] sm:$0xf]
        %v752 = vld [vmem:[%s325 + $0x38] sm:$0xf]
        %v753 = vld [vmem:[%s325 + $0x3c] sm:$0xf]
        %v754 = vld [vmem:[%s279] sm:$0xf]
        %v755 = vld [vmem:[%s279 + $0x4] sm:$0xf]
        %v756 = vld [vmem:[%s279 + $0x8] sm:$0xf]
        %v757 = vld [vmem:[%s279 + $0xc] sm:$0xf]
        %v758 = vld [vmem:[%s279 + $0x10] sm:$0xf]
        %v759 = vld [vmem:[%s279 + $0x14] sm:$0xf]
        %v760 = vld [vmem:[%s279 + $0x18] sm:$0xf]
        %v761 = vld [vmem:[%s279 + $0x1c] sm:$0xf]
        %v762 = vld [vmem:[%s279 + $0x20] sm:$0xf]
        %v763 = vld [vmem:[%s279 + $0x24] sm:$0xf]
        %v764 = vld [vmem:[%s279 + $0x28] sm:$0xf]
        %v765 = vld [vmem:[%s279 + $0x2c] sm:$0xf]
        %v766 = vld [vmem:[%s279 + $0x30] sm:$0xf]
        %v767 = vld [vmem:[%s279 + $0x34] sm:$0xf]
        %v768 = vld [vmem:[%s279 + $0x38] sm:$0xf]
        %v769 = vld [vmem:[%s279 + $0x3c] sm:$0xf]
        %v786 = vunpack.c.l.b16 %v754
        %v787 = vunpack.c.l.b16 %v755
        %v788 = vunpack.c.l.b16 %v756
        %v789 = vunpack.c.l.b16 %v757
        %v790 = vunpack.c.l.b16 %v758
        %v791 = vunpack.c.l.b16 %v759
        %v792 = vunpack.c.l.b16 %v760
        %v793 = vunpack.c.l.b16 %v761
        %v794 = vunpack.c.l.b16 %v762
        %v795 = vunpack.c.l.b16 %v763
        %v796 = vunpack.c.l.b16 %v764
        %v797 = vunpack.c.l.b16 %v765
        %v798 = vunpack.c.l.b16 %v766
        %v799 = vunpack.c.l.b16 %v767
        %v800 = vunpack.c.l.b16 %v768
        %v801 = vunpack.c.l.b16 %v769
        %v802 = vpack.c.b16 %v787, %v786
        %v803 = vpack.c.b16 %v789, %v788
        %v804 = vpack.c.b16 %v791, %v790
        %v805 = vpack.c.b16 %v793, %v792
        %v806 = vpack.c.b16 %v795, %v794
        %v807 = vpack.c.b16 %v797, %v796
        %v808 = vpack.c.b16 %v799, %v798
        %v809 = vpack.c.b16 %v801, %v800
        %818 = vmatprep.subr.bf16.mxu0 0
        %819 = vmatpush1.bf16.msra.mxu0 %v809
        %820 = vmatprep.subr.bf16.mxu0 0
        %821 = vmatpush1.bf16.msra.mxu0 %v808
        %822 = vmatprep.subr.bf16.mxu0 0
        %823 = vmatpush1.bf16.msra.mxu0 %v807
        %824 = vmatprep.subr.bf16.mxu0 0
        %825 = vmatpush1.bf16.msra.mxu0 %v806
        %826 = vmatprep.subr.bf16.mxu0 0
        %827 = vmatpush1.bf16.msra.mxu0 %v805
        %828 = vmatprep.subr.bf16.mxu0 0
        %829 = vmatpush1.bf16.msra.mxu0 %v804
        %830 = vmatprep.subr.bf16.mxu0 0
        %831 = vmatpush1.bf16.msra.mxu0 %v803
        %832 = vmatprep.subr.bf16.mxu0 0
        %833 = vmatpush1.bf16.msra.mxu0 %v802
        %834 = vmatprep.subr.bf16.mxu0 0
        %835 = vmatpush2.bf16.msra.mxu0 0
        %836 = vmatprep.subr.bf16.mxu0 0
        %837 = vmatpush2.bf16.msra.mxu0 0
        %838 = vmatprep.subr.bf16.mxu0 0
        %839 = vmatpush2.bf16.msra.mxu0 0
        %840 = vmatprep.subr.bf16.mxu0 0
        %841 = vmatpush2.bf16.msra.mxu0 0
        %842 = vmatprep.subr.bf16.mxu0 0
        %843 = vmatpush2.bf16.msra.mxu0 0
        %844 = vmatprep.subr.bf16.mxu0 0
        %845 = vmatpush2.bf16.msra.mxu0 0
        %846 = vmatprep.subr.bf16.mxu0 0
        %847 = vmatpush2.bf16.msra.mxu0 0
        %848 = vmatprep.subr.bf16.mxu0 0
        %849 = vmatpush2.bf16.msra.mxu0 0
        %850 = vmatprep.mubr.bf16.mxu0 0
        %851 = vmatmul.mubr.bf16.gmra.mxu0 %v730
        %v852 = vpop.f32.mrf.mxu0
        %v853 = vadd.f32 0.0, %v852
        %v854 = vpop.f32.mrf.mxu0
        %v855 = vpop.f32.mrf.mxu0
        %v856 = vadd.f32 0.0, %v855
        %v857 = vpop.f32.mrf.mxu0
        %858 = vmatprep.mubr.bf16.mxu0 0
        %859 = vmatmul.mubr.bf16.gmra.mxu0 %v731
        %v860 = vpop.f32.mrf.mxu0
        %v861 = vadd.f32 0.0, %v860
        %v862 = vpop.f32.mrf.mxu0
        %v863 = vpop.f32.mrf.mxu0
        %v864 = vadd.f32 0.0, %v863
        %v865 = vpop.f32.mrf.mxu0
        %866 = vmatprep.mubr.bf16.mxu0 0
        %867 = vmatmul.mubr.bf16.gmra.mxu0 %v732
        %v868 = vpop.f32.mrf.mxu0
        %v869 = vadd.f32 0.0, %v868
        %v870 = vpop.f32.mrf.mxu0
        %v871 = vpop.f32.mrf.mxu0
        %v872 = vadd.f32 0.0, %v871
        %v873 = vpop.f32.mrf.mxu0
        %874 = vmatprep.mubr.bf16.mxu0 0
        %875 = vmatmul.mubr.bf16.gmra.mxu0 %v733
        %v876 = vpop.f32.mrf.mxu0
        %v877 = vadd.f32 0.0, %v876
        %v878 = vpop.f32.mrf.mxu0
        %v879 = vpop.f32.mrf.mxu0
        %v880 = vadd.f32 0.0, %v879
        %v881 = vpop.f32.mrf.mxu0
        %882 = vmatprep.mubr.bf16.mxu0 0
        %883 = vmatmul.mubr.bf16.gmra.mxu0 %v734
        %v884 = vpop.f32.mrf.mxu0
        %v885 = vadd.f32 0.0, %v884
        %v886 = vpop.f32.mrf.mxu0
        %v887 = vpop.f32.mrf.mxu0
        %v888 = vadd.f32 0.0, %v887
        %v889 = vpop.f32.mrf.mxu0
        %890 = vmatprep.mubr.bf16.mxu0 0
        %891 = vmatmul.mubr.bf16.gmra.mxu0 %v735
        %v892 = vpop.f32.mrf.mxu0
        %v893 = vadd.f32 0.0, %v892
        %v894 = vpop.f32.mrf.mxu0
        %v895 = vpop.f32.mrf.mxu0
        %v896 = vadd.f32 0.0, %v895
        %v897 = vpop.f32.mrf.mxu0
        %898 = vmatprep.mubr.bf16.mxu0 0
        %899 = vmatmul.mubr.bf16.gmra.mxu0 %v736
        %v900 = vpop.f32.mrf.mxu0
        %v901 = vadd.f32 0.0, %v900
        %v902 = vpop.f32.mrf.mxu0
        %v903 = vpop.f32.mrf.mxu0
        %v904 = vadd.f32 0.0, %v903
        %v905 = vpop.f32.mrf.mxu0
        %906 = vmatprep.mubr.bf16.mxu0 0
        %907 = vmatmul.mubr.bf16.gmra.mxu0 %v737
        %v908 = vpop.f32.mrf.mxu0
        %v909 = vadd.f32 0.0, %v908
        %v910 = vpop.f32.mrf.mxu0
        %v911 = vpop.f32.mrf.mxu0
        %v912 = vadd.f32 0.0, %v911
        %v913 = vpop.f32.mrf.mxu0
        %914 = vdwg.mxu0
        %v931 = vunpack.c.l.b16 %v393
        %v932 = vunpack.c.l.b16 %v394
        %v933 = vunpack.c.l.b16 %v395
        %v934 = vunpack.c.l.b16 %v396
        %v935 = vunpack.c.l.b16 %v397
        %v936 = vunpack.c.l.b16 %v398
        %v937 = vunpack.c.l.b16 %v399
        %v938 = vunpack.c.l.b16 %v400
        %v939 = vunpack.c.l.b16 %v401
        %v940 = vunpack.c.l.b16 %v402
        %v941 = vunpack.c.l.b16 %v403
        %v942 = vunpack.c.l.b16 %v404
        %v943 = vunpack.c.l.b16 %v405
        %v944 = vunpack.c.l.b16 %v406
        %v945 = vunpack.c.l.b16 %v407
        %v946 = vunpack.c.l.b16 %v408
        %v947 = vpack.c.b16 %v932, %v931
        %v948 = vpack.c.b16 %v934, %v933
        %v949 = vpack.c.b16 %v936, %v935
        %v950 = vpack.c.b16 %v938, %v937
        %v951 = vpack.c.b16 %v940, %v939
        %v952 = vpack.c.b16 %v942, %v941
        %v953 = vpack.c.b16 %v944, %v943
        %v954 = vpack.c.b16 %v946, %v945
        %v979 = vunpack.c.l.b16 %v738
        %v980 = vunpack.c.l.b16 %v739
        %v981 = vunpack.c.l.b16 %v740
        %v982 = vunpack.c.l.b16 %v741
        %v983 = vunpack.c.l.b16 %v742
        %v984 = vunpack.c.l.b16 %v743
        %v985 = vunpack.c.l.b16 %v744
        %v986 = vunpack.c.l.b16 %v745
        %v987 = vunpack.c.l.b16 %v746
        %v988 = vunpack.c.l.b16 %v747
        %v989 = vunpack.c.l.b16 %v748
        %v990 = vunpack.c.l.b16 %v749
        %v991 = vunpack.c.l.b16 %v750
        %v992 = vunpack.c.l.b16 %v751
        %v993 = vunpack.c.l.b16 %v752
        %v994 = vunpack.c.l.b16 %v753
        %v995 = vpack.c.b16 %v980, %v979
        %v996 = vpack.c.b16 %v982, %v981
        %v997 = vpack.c.b16 %v984, %v983
        %v998 = vpack.c.b16 %v986, %v985
        %v999 = vpack.c.b16 %v988, %v987
        %v1000 = vpack.c.b16 %v990, %v989
        %v1001 = vpack.c.b16 %v992, %v991
        %v1002 = vpack.c.b16 %v994, %v993
        %1011 = vmatprep.subr.bf16.mxu0 0
        %1012 = vmatpush1.bf16.msra.mxu0 %v1002
        %1013 = vmatprep.subr.bf16.mxu0 0
        %1014 = vmatpush1.bf16.msra.mxu0 %v1001
        %1015 = vmatprep.subr.bf16.mxu0 0
        %1016 = vmatpush1.bf16.msra.mxu0 %v1000
        %1017 = vmatprep.subr.bf16.mxu0 0
        %1018 = vmatpush1.bf16.msra.mxu0 %v999
        %1019 = vmatprep.subr.bf16.mxu0 0
        %1020 = vmatpush1.bf16.msra.mxu0 %v998
        %1021 = vmatprep.subr.bf16.mxu0 0
        %1022 = vmatpush1.bf16.msra.mxu0 %v997
        %1023 = vmatprep.subr.bf16.mxu0 0
        %1024 = vmatpush1.bf16.msra.mxu0 %v996
        %1025 = vmatprep.subr.bf16.mxu0 0
        %1026 = vmatpush1.bf16.msra.mxu0 %v995
        %1027 = vmatprep.subr.bf16.mxu0 0
        %1028 = vmatpush2.bf16.msra.mxu0 0
        %1029 = vmatprep.subr.bf16.mxu0 0
        %1030 = vmatpush2.bf16.msra.mxu0 0
        %1031 = vmatprep.subr.bf16.mxu0 0
        %1032 = vmatpush2.bf16.msra.mxu0 0
        %1033 = vmatprep.subr.bf16.mxu0 0
        %1034 = vmatpush2.bf16.msra.mxu0 0
        %1035 = vmatprep.subr.bf16.mxu0 0
        %1036 = vmatpush2.bf16.msra.mxu0 0
        %1037 = vmatprep.subr.bf16.mxu0 0
        %1038 = vmatpush2.bf16.msra.mxu0 0
        %1039 = vmatprep.subr.bf16.mxu0 0
        %1040 = vmatpush2.bf16.msra.mxu0 0
        %1041 = vmatprep.subr.bf16.mxu0 0
        %1042 = vmatpush2.bf16.msra.mxu0 0
        %1043 = vmatprep.mubr.bf16.mxu0 0
        %1044 = vmatmul.mubr.bf16.gmra.mxu0 %v947
        %v1045 = vpop.f32.mrf.mxu0
        %v1046 = vadd.f32 %v853, %v1045
        %v1047 = vpop.f32.mrf.mxu0
        %v1048 = vpop.f32.mrf.mxu0
        %v1049 = vadd.f32 %v856, %v1048
        %v1050 = vpop.f32.mrf.mxu0
        %1051 = vmatprep.mubr.bf16.mxu0 0
        %1052 = vmatmul.mubr.bf16.gmra.mxu0 %v948
        %v1053 = vpop.f32.mrf.mxu0
        %v1054 = vadd.f32 %v861, %v1053
        %v1055 = vpop.f32.mrf.mxu0
        %v1056 = vpop.f32.mrf.mxu0
        %v1057 = vadd.f32 %v864, %v1056
        %v1058 = vpop.f32.mrf.mxu0
        %1059 = vmatprep.mubr.bf16.mxu0 0
        %1060 = vmatmul.mubr.bf16.gmra.mxu0 %v949
        %v1061 = vpop.f32.mrf.mxu0
        %v1062 = vadd.f32 %v869, %v1061
        %v1063 = vpop.f32.mrf.mxu0
        %v1064 = vpop.f32.mrf.mxu0
        %v1065 = vadd.f32 %v872, %v1064
        %v1066 = vpop.f32.mrf.mxu0
        %1067 = vmatprep.mubr.bf16.mxu0 0
        %1068 = vmatmul.mubr.bf16.gmra.mxu0 %v950
        %v1069 = vpop.f32.mrf.mxu0
        %v1070 = vadd.f32 %v877, %v1069
        %v1071 = vpop.f32.mrf.mxu0
        %v1072 = vpop.f32.mrf.mxu0
        %v1073 = vadd.f32 %v880, %v1072
        %v1074 = vpop.f32.mrf.mxu0
        %1075 = vmatprep.mubr.bf16.mxu0 0
        %1076 = vmatmul.mubr.bf16.gmra.mxu0 %v951
        %v1077 = vpop.f32.mrf.mxu0
        %v1078 = vadd.f32 %v885, %v1077
        %v1079 = vpop.f32.mrf.mxu0
        %v1080 = vpop.f32.mrf.mxu0
        %v1081 = vadd.f32 %v888, %v1080
        %v1082 = vpop.f32.mrf.mxu0
        %1083 = vmatprep.mubr.bf16.mxu0 0
        %1084 = vmatmul.mubr.bf16.gmra.mxu0 %v952
        %v1085 = vpop.f32.mrf.mxu0
        %v1086 = vadd.f32 %v893, %v1085
        %v1087 = vpop.f32.mrf.mxu0
        %v1088 = vpop.f32.mrf.mxu0
        %v1089 = vadd.f32 %v896, %v1088
        %v1090 = vpop.f32.mrf.mxu0
        %1091 = vmatprep.mubr.bf16.mxu0 0
        %1092 = vmatmul.mubr.bf16.gmra.mxu0 %v953
        %v1093 = vpop.f32.mrf.mxu0
        %v1094 = vadd.f32 %v901, %v1093
        %v1095 = vpop.f32.mrf.mxu0
        %v1096 = vpop.f32.mrf.mxu0
        %v1097 = vadd.f32 %v904, %v1096
        %v1098 = vpop.f32.mrf.mxu0
        %1099 = vmatprep.mubr.bf16.mxu0 0
        %1100 = vmatmul.mubr.bf16.gmra.mxu0 %v954
        %v1101 = vpop.f32.mrf.mxu0
        %v1102 = vadd.f32 %v909, %v1101
        %v1103 = vpop.f32.mrf.mxu0
        %v1104 = vpop.f32.mrf.mxu0
        %v1105 = vadd.f32 %v912, %v1104
        %v1106 = vpop.f32.mrf.mxu0
        %1107 = vdwg.mxu0
        %v1108 = vld [vmem:[%s328] sm:$0x1]
        %v1110 = vlaneseq
        %v1111 = vshrl.u32 %v1110, 7
        %v1112 = vsub.s32 0, %v1111
        %v1113 = vrot.slane %v1108, %v1112
        %v1115 = vadd.f32 %v1046, %v1113
        %v1116 = vadd.f32 %v1049, %v1113
        %v1117 = vadd.f32 %v1054, %v1113
        %v1118 = vadd.f32 %v1057, %v1113
        %v1119 = vadd.f32 %v1062, %v1113
        %v1120 = vadd.f32 %v1065, %v1113
        %v1121 = vadd.f32 %v1070, %v1113
        %v1122 = vadd.f32 %v1073, %v1113
        %v1123 = vadd.f32 %v1078, %v1113
        %v1124 = vadd.f32 %v1081, %v1113
        %v1125 = vadd.f32 %v1086, %v1113
        %v1126 = vadd.f32 %v1089, %v1113
        %v1127 = vadd.f32 %v1094, %v1113
        %v1128 = vadd.f32 %v1097, %v1113
        %v1129 = vadd.f32 %v1102, %v1113
        %v1130 = vadd.f32 %v1105, %v1113
        %v1131 = vmax.f32 %v1115, 0.0
        %v1132 = vmax.f32 %v1116, 0.0
        %v1133 = vmax.f32 %v1117, 0.0
        %v1134 = vmax.f32 %v1118, 0.0
        %v1135 = vmax.f32 %v1119, 0.0
        %v1136 = vmax.f32 %v1120, 0.0
        %v1137 = vmax.f32 %v1121, 0.0
        %v1138 = vmax.f32 %v1122, 0.0
        %v1139 = vmax.f32 %v1123, 0.0
        %v1140 = vmax.f32 %v1124, 0.0
        %v1141 = vmax.f32 %v1125, 0.0
        %v1142 = vmax.f32 %v1126, 0.0
        %v1143 = vmax.f32 %v1127, 0.0
        %v1144 = vmax.f32 %v1128, 0.0
        %v1145 = vmax.f32 %v1129, 0.0
        %v1146 = vmax.f32 %v1130, 0.0
        %1147 = vst [vmem:[#allocation9] sm:$0xff] %v1131
        %1148 = vst [vmem:[#allocation9 + $0x8] sm:$0xff] %v1132
        %1149 = vst [vmem:[#allocation9 + $0x10] sm:$0xff] %v1133
        %1150 = vst [vmem:[#allocation9 + $0x18] sm:$0xff] %v1134
        %1151 = vst [vmem:[#allocation9 + $0x20] sm:$0xff] %v1135
        %1152 = vst [vmem:[#allocation9 + $0x28] sm:$0xff] %v1136
        %1153 = vst [vmem:[#allocation9 + $0x30] sm:$0xff] %v1137
        %1154 = vst [vmem:[#allocation9 + $0x38] sm:$0xff] %v1138
        %1155 = vst [vmem:[#allocation9 + $0x40] sm:$0xff] %v1139
        %1156 = vst [vmem:[#allocation9 + $0x48] sm:$0xff] %v1140
        %1157 = vst [vmem:[#allocation9 + $0x50] sm:$0xff] %v1141
        %1158 = vst [vmem:[#allocation9 + $0x58] sm:$0xff] %v1142
        %1159 = vst [vmem:[#allocation9 + $0x60] sm:$0xff] %v1143
        %1160 = vst [vmem:[#allocation9 + $0x68] sm:$0xff] %v1144
        %1161 = vst [vmem:[#allocation9 + $0x70] sm:$0xff] %v1145
        %1162 = vst [vmem:[#allocation9 + $0x78] sm:$0xff] %v1146
        %p1163 = scmp.lt.s32.totalorder %s26, 1
        // Predicated region
        $region57: #{tpu_custom_call.1} parent=39 // pred_check
          %p1164 = pneg %p1163
        $region58: #{tpu_custom_call.1} parent=39 // pred_check_branch
          %1166 = sbr.rel (%p1164) target = $region60
        $region59: #{tpu_custom_call.1} parent=39 // pred_region
          %v1167 = vpack.c.bf16 %v1132, %v1131
          %v1168 = vpack.c.bf16 %v1134, %v1133
          %v1169 = vpack.c.bf16 %v1136, %v1135
          %v1170 = vpack.c.bf16 %v1138, %v1137
          %v1171 = vpack.c.bf16 %v1140, %v1139
          %v1172 = vpack.c.bf16 %v1142, %v1141
          %v1173 = vpack.c.bf16 %v1144, %v1143
          %v1174 = vpack.c.bf16 %v1146, %v1145
          %s1175 = sadd.s32 %s366, %s367
          %v1184 = vunpack.c.l.b16 %v1167
          %v1185 = vunpack.c.h.b16 %v1167
          %v1186 = vunpack.c.l.b16 %v1168
          %v1187 = vunpack.c.h.b16 %v1168
          %v1188 = vunpack.c.l.b16 %v1169
          %v1189 = vunpack.c.h.b16 %v1169
          %v1190 = vunpack.c.l.b16 %v1170
          %v1191 = vunpack.c.h.b16 %v1170
          %v1192 = vunpack.c.l.b16 %v1171
          %v1193 = vunpack.c.h.b16 %v1171
          %v1194 = vunpack.c.l.b16 %v1172
          %v1195 = vunpack.c.h.b16 %v1172
          %v1196 = vunpack.c.l.b16 %v1173
          %v1197 = vunpack.c.h.b16 %v1173
          %v1198 = vunpack.c.l.b16 %v1174
          %v1199 = vunpack.c.h.b16 %v1174
          %v1200 = vpack.c.b16 %v1184, %v1184
          %v1201 = vpack.c.b16 %v1185, %v1185
          %v1202 = vpack.c.b16 %v1186, %v1186
          %v1203 = vpack.c.b16 %v1187, %v1187
          %v1204 = vpack.c.b16 %v1188, %v1188
          %v1205 = vpack.c.b16 %v1189, %v1189
          %v1206 = vpack.c.b16 %v1190, %v1190
          %v1207 = vpack.c.b16 %v1191, %v1191
          %v1208 = vpack.c.b16 %v1192, %v1192
          %v1209 = vpack.c.b16 %v1193, %v1193
          %v1210 = vpack.c.b16 %v1194, %v1194
          %v1211 = vpack.c.b16 %v1195, %v1195
          %v1212 = vpack.c.b16 %v1196, %v1196
          %v1213 = vpack.c.b16 %v1197, %v1197
          %v1214 = vpack.c.b16 %v1198, %v1198
          %v1215 = vpack.c.b16 %v1199, %v1199
          %s1232 = sshra.s32 %s1175, 3
          %s1233 = sand.u32 %s1175, 7
          %s1234 = smul.addr %s1232, 4
          %s1235 = scalar_lea.vmem [#allocation2], %s1234
          %1236 = vst [vmem:[%s1235] sm:$0xf] %v1200
          %1237 = vst [vmem:[%s1235 + $0x4] sm:$0xf] %v1201
          %1238 = vst [vmem:[%s1235 + $0x8] sm:$0xf] %v1202
          %1239 = vst [vmem:[%s1235 + $0xc] sm:$0xf] %v1203
          %1240 = vst [vmem:[%s1235 + $0x10] sm:$0xf] %v1204
          %1241 = vst [vmem:[%s1235 + $0x14] sm:$0xf] %v1205
          %1242 = vst [vmem:[%s1235 + $0x18] sm:$0xf] %v1206
          %1243 = vst [vmem:[%s1235 + $0x1c] sm:$0xf] %v1207
          %1244 = vst [vmem:[%s1235 + $0x20] sm:$0xf] %v1208
          %1245 = vst [vmem:[%s1235 + $0x24] sm:$0xf] %v1209
          %1246 = vst [vmem:[%s1235 + $0x28] sm:$0xf] %v1210
          %1247 = vst [vmem:[%s1235 + $0x2c] sm:$0xf] %v1211
          %1248 = vst [vmem:[%s1235 + $0x30] sm:$0xf] %v1212
          %1249 = vst [vmem:[%s1235 + $0x34] sm:$0xf] %v1213
          %1250 = vst [vmem:[%s1235 + $0x38] sm:$0xf] %v1214
          %1251 = vst [vmem:[%s1235 + $0x3c] sm:$0xf] %v1215
        $region60: #{tpu_custom_call.1} parent=39 // pred_fallthru
          _
        // Predicated region
        $region61: #{tpu_custom_call.1} parent=39 // pred_check
          %p1252 = pneg %p182
        $region62: #{tpu_custom_call.1} parent=39 // pred_check_branch
          %1254 = sbr.rel (%p1252) target = $region64
        $region63: #{tpu_custom_call.1} parent=39 // pred_region
          %s1255 = smul.u32 16, %s27
          %s1257 = ssub.s32 2048, 2048
          %1258 = vsyncadd [#allocation6], %s1257
          %s1259 = smul.addr %s1255, 128
          %s1260 = scalar_lea.hbm %s6, %s1259
          %s1261 = sshll.u32 [#allocation9], 4
          %s1262 = int_to_ptr.vmem [resolvable:$true] %s1261
          %1267 = dma.vmem_to_hbm [thread:$0]  %s1262, 2048, %s1260, [#allocation6], 128, 128, 8
        $region64: #{tpu_custom_call.1} parent=39 // pred_fallthru
          _
        // Predicated region
        $region65: #{tpu_custom_call.1} parent=39 // pred_check
          %p1268 = pneg %p182
        $region66: #{tpu_custom_call.1} parent=39 // pred_check_branch
          %1270 = sbr.rel (%p1268) target = $region68
        $region67: #{tpu_custom_call.1} parent=39 // pred_region
          %1271 = dma.done [#allocation6], 2048
        $region68: #{tpu_custom_call.1} parent=39 // pred_fallthru
          _
      $region40: #{tpu_custom_call.1} parent=5 // pred_fallthru
        _
      %p1272 = scmp.le.s32.totalorder 2, %s17
      // Predicated region
      $region69: #{tpu_custom_call.1} parent=5 // pred_check
        %p1273 = pneg %p1272
      $region70: #{tpu_custom_call.1} parent=5 // pred_check_branch
        %1275 = sbr.rel (%p1273) target = $region72
      $region71: #{tpu_custom_call.1} parent=5 // pred_region
        %s1276 = ssub.s32 %s17, 2
      $region72: #{tpu_custom_call.1} parent=5 // pred_fallthru
        _
    $region6: #{tpu_custom_call.1} parent=1 // loop_footer
      %s21 = sadd.s32 1, %s17
    $region7: #{tpu_custom_call.1} parent=1 // loop_footer_branch
      %16 = sbr.rel target = $region3
    $region8: #{tpu_custom_call.1} parent=1 // loop_exit
      _
    %1277 = vsyncpa [#allocation5], 1
    %s1278 = scalar_lea.sflag [#allocation5], 1
    %1279 = vsyncpa %s1278, 1
    %1280 = vsyncpa [#allocation8], 1
    %s1281 = scalar_lea.sflag [#allocation8], 1
    %1282 = vsyncpa %s1281, 1
    %1283 = vsyncpa [#allocation6], 1
    %s1284 = scalar_lea.sflag [#allocation6], 1
    %1285 = vsyncpa %s1284, 1
  %1286 = vsyncmov [#allocation3]
  %s1287 = vpop.sfrf %1286
  %p1288 = scmp.eq.s32.totalorder %s1287, 0
  %p1289 = pneg %p1288
  %1291 = shalt.err (%p1289)

</llo_original>
